<compile_context>
chip_gen: v6e
topology: v6e:2x2x1
jax: 0.10.0
libtpu: 0.0.40
codegen_flags: <defaults>
</compile_context>

<pallas_src>
import functools

import jax
import jax.numpy as jnp
from jax.experimental import pallas as pl
from jax.experimental.pallas import tpu as pltpu


def _neg_sampling_loss_kernel(stk_ref, inp_ref, w_ref, out_ref, *, num_targets):
    eps = 1e-10

    # Single MXU matmul; contraction over D expressed directly (no inp.T):
    #   scores[r, b] = sum_d stacked[r, d] * input[b, d]      -> (R, B) f32
    scores = jax.lax.dot_general(
        stk_ref[...], inp_ref[...],
        dimension_numbers=(((1,), (1,)), ((), ())),
        preferred_element_type=jnp.float32,
    )

    # +scores for target rows, -scores for negative rows.  Padded rows (if
    # any) fall in the "negative" branch but have zero weight -> 0 loss.
    row = jax.lax.broadcasted_iota(jnp.int32, scores.shape, 0)
    signed = jnp.where(row < num_targets, scores, -scores)

    # Matches the PyTorch module exactly: log(sigmoid(x) + eps).
    loss = -jnp.sum(
        jnp.log(jax.nn.sigmoid(signed) + eps) * w_ref[...].astype(jnp.float32)
    )
    out_ref[0, 0] = loss


def negative_sampling_loss(input_vectors, target_vectors, negative_vectors,
                           targets_weight, negatives_weight):
    """Pallas TPU implementation of NegativeSamplingLoss.forward."""
    B, D = input_vectors.shape
    T = target_vectors.shape[0]
    N = negative_vectors.shape[0]
    R = T + N

    # Fuse targets + negatives into one MXU operand / one weight matrix.
    stacked = jnp.concatenate([target_vectors, negative_vectors], axis=0)  # (R, D)
    weights = jnp.concatenate([targets_weight, negatives_weight], axis=0)  # (R, B)
    inp = input_vectors                                                    # (B, D)

    # Pad the row axis to a sublane multiple (8).  Padded rows have zero
    # vectors AND zero weight, so they contribute exactly 0 to the loss.
    r_pad = -(-R // 8) * 8
    if r_pad != R:
        stacked = jnp.pad(stacked, ((0, r_pad - R), (0, 0)))
        weights = jnp.pad(weights, ((0, r_pad - R), (0, 0)))

    # Pad D (lane axis of both matmul operands) to a multiple of 128 so the
    # MXU sees lane-dense tiles; zero columns contribute 0 to the contraction.
    d_pad = -(-D // 128) * 128
    if d_pad != D:
        stacked = jnp.pad(stacked, ((0, 0), (0, d_pad - D)))
        inp = jnp.pad(inp, ((0, 0), (0, d_pad - D)))

    kernel = functools.partial(_neg_sampling_loss_kernel, num_targets=T)

    bytes_accessed = (
        stacked.size * stacked.dtype.itemsize
        + inp.size * inp.dtype.itemsize
        + weights.size * weights.dtype.itemsize
        + 4  # scalar output
    )
    cost = pl.CostEstimate(
        flops=2 * r_pad * B * d_pad,
        transcendentals=2 * r_pad * B,      # sigmoid (exp+recip fused) + log
        bytes_accessed=bytes_accessed,
    )

    # Everything fits comfortably in VMEM at these shapes -> single full-array
    # blocks, no grid.  (If this loss is evaluated over many independent
    # instances, batch them with a leading "parallel" grid axis instead of one
    # pallas_call per instance — per-call overhead dwarfs compute here.)
    # TODO(synk): add a batched (grid) variant for many-instance training steps.
    out = pl.pallas_call(
        kernel,
        out_shape=jax.ShapeDtypeStruct((1, 1), jnp.float32),
        in_specs=[pl.BlockSpec(memory_space=pltpu.VMEM)] * 3,
        out_specs=pl.BlockSpec(memory_space=pltpu.SMEM),
        cost_estimate=cost,
    )(stacked, inp, weights)
    return out[0, 0]


def _reference_loss(input_vectors, target_vectors, negative_vectors,
                    targets_weight, negatives_weight):
    eps = 1e-10
    t = -jnp.sum(
        jnp.log(jax.nn.sigmoid(target_vectors @ input_vectors.T) + eps)
        * targets_weight
    )
    n = -jnp.sum(
        jnp.log(jax.nn.sigmoid(-(negative_vectors @ input_vectors.T)) + eps)
        * negatives_weight
    )
    return t + n


if __name__ == "__main__":
    # Small, module-consistent shapes: batch B=8, hidden D=32,
    # T=8 positive samples, N=16 negative samples.
    B, D, T, N = 8, 32, 8, 16

    key = jax.random.PRNGKey(0)
    k1, k2, k3, k4, k5 = jax.random.split(key, 5)

    input_vectors = jax.random.normal(k1, (B, D), dtype=jnp.float32)
    target_vectors = jax.random.normal(k2, (T, D), dtype=jnp.float32)
    negative_vectors = jax.random.normal(k3, (N, D), dtype=jnp.float32)
    targets_weight = jax.random.uniform(k4, (T, B), dtype=jnp.float32)
    negatives_weight = jax.random.uniform(k5, (N, B), dtype=jnp.float32)

    loss = negative_sampling_loss(
        input_vectors, target_vectors, negative_vectors,
        targets_weight, negatives_weight,
    )
    jax.block_until_ready(loss)

    ref = _reference_loss(
        input_vectors, target_vectors, negative_vectors,
        targets_weight, negatives_weight,
    )
    assert jnp.allclose(loss, ref, rtol=1e-5, atol=1e-5), (loss, ref)

    print("KERNEL_OK")
</pallas_src>

<mosaic_0001>
module attributes {stable_mosaic.version = 11 : i64} {
  func.func @_neg_sampling_loss_kernel(%arg0: memref<24x128xf32, #tpu.memory_space<vmem>>, %arg1: memref<8x128xf32, #tpu.memory_space<vmem>>, %arg2: memref<24x8xf32, #tpu.memory_space<vmem>>, %arg3: memref<1x1xf32, #tpu.memory_space<smem>>) attributes {dimension_semantics = [], scalar_prefetch = 0 : i64, scratch_operands = 0 : i64, tpu.core_type = #tpu.core_type<tc>} {
    %c0 = arith.constant 0 : index
    %c0_0 = arith.constant 0 : index
    %0 = vector.load %arg0[%c0, %c0_0] : memref<24x128xf32, #tpu.memory_space<vmem>>, vector<24x128xf32>
    %c0_1 = arith.constant 0 : index
    %c0_2 = arith.constant 0 : index
    %1 = vector.load %arg1[%c0_1, %c0_2] : memref<8x128xf32, #tpu.memory_space<vmem>>, vector<8x128xf32>
    %cst = arith.constant dense<0.000000e+00> : vector<24x8xf32>
    %2 = tpu.matmul %0, %1, %cst {dimension_numbers = #tpu.dot_dimension_numbers<[1], [1], [0], [0], [0, 0, 1, 0], [], []>} : vector<24x128xf32>, vector<8x128xf32>, vector<24x8xf32> -> vector<24x8xf32>
    %3 = tpu.iota {dimensions = array<i32: 0>} : vector<24x8xi32>
    %c8_i32 = arith.constant 8 : i32
    %4 = vector.broadcast %c8_i32 : i32 to vector<24x8xi32>
    %5 = arith.cmpi slt, %3, %4 : vector<24x8xi32>
    %cst_3 = arith.constant 0.000000e+00 : f32
    %6 = vector.broadcast %cst_3 : f32 to vector<24x8xf32>
    %7 = arith.subf %6, %2 : vector<24x8xf32>
    %8 = arith.select %5, %2, %7 : vector<24x8xi1>, vector<24x8xf32>
    %9 = arith.negf %8 : vector<24x8xf32>
    %10 = math.exp %9 : vector<24x8xf32>
    %cst_4 = arith.constant 1.000000e+00 : f32
    %11 = vector.broadcast %cst_4 : f32 to vector<24x8xf32>
    %12 = arith.addf %11, %10 : vector<24x8xf32>
    %13 = arith.divf %11, %12 : vector<24x8xf32>
    %cst_5 = arith.constant 1.000000e-10 : f32
    %14 = vector.broadcast %cst_5 : f32 to vector<24x8xf32>
    %15 = arith.addf %13, %14 : vector<24x8xf32>
    %16 = math.log %15 : vector<24x8xf32>
    %c0_6 = arith.constant 0 : index
    %c0_7 = arith.constant 0 : index
    %17 = vector.load %arg2[%c0_6, %c0_7] : memref<24x8xf32, #tpu.memory_space<vmem>>, vector<24x8xf32>
    %18 = arith.mulf %16, %17 : vector<24x8xf32>
    %19 = vector.shape_cast %18 : vector<24x8xf32> to vector<1x24x8xf32>
    %cst_8 = arith.constant dense<0.000000e+00> : vector<1xf32>
    %20 = vector.multi_reduction <add>, %19, %cst_8 [1, 2] : vector<1x24x8xf32> to vector<1xf32>
    %21 = vector.shape_cast %20 : vector<1xf32> to vector<1x1x1xf32>
    %22 = vector.extract %21[0, 0, 0] : f32 from vector<1x1x1xf32>
    %cst_9 = arith.constant 0.000000e+00 : f32
    %23 = arith.subf %cst_9, %22 : f32
    %c0_10 = arith.constant 0 : index
    %c0_11 = arith.constant 0 : index
    %24 = memref.load %arg3[%c0_10, %c0_11] : memref<1x1xf32, #tpu.memory_space<smem>>
    memref.store %23, %arg3[%c0_10, %c0_11] : memref<1x1xf32, #tpu.memory_space<smem>>
    return
  }
}

</mosaic_0001>

<llo_original>
// kernel: tpu_custom_call.1
$region0: #{tpu_custom_call.1}
  #allocation0 [shape = 'u32[]', space=smem, size = 0x4, offset = 0x4, fixed_abs, tag = 'smem constant byte address 0x4 - core index']
  #allocation1 [shape = 'u32[144,128]{1,0:T(1,128)}', space=vmem, size = 0x12000, scoped, tag = 'internal scratch']
  %s0 = inlined_call_operand.vmem [shape: f32[24,128], index: 0, kind: input, shape index: {}]
  %s1 = inlined_call_operand.vmem [shape: f32[8,128], index: 1, kind: input, shape index: {}]
  %s2 = inlined_call_operand.vmem [shape: f32[24,8], index: 2, kind: input, shape index: {}]
  %s3 = inlined_call_operand.hbm [shape: f32[1,1], index: 3, kind: output, shape index: {}]
  %s4 = sld [smem:[#allocation0]]
  $region22: #{tpu_custom_call.1} parent=0
    _
  %s6 = ssub.s32 1, %s4
  %s7 = scalar_select 0, %s6, %s4
  $region1: #{tpu_custom_call.1} parent=0
    #allocation2 [shape = 'u8[512]{0}', space=smem, size = 0x200, scoped, tag = 'output window, operand 0, single buffered']
    #allocation3 [shape = 's32[1]{0}', space=sflag, size = 0x4, scoped, tag = 'scoped memory for tpu_custom_call.1']
    %8 = vsyncpa [#allocation3], 0
    // Predicated region
    $region2: #{tpu_custom_call.1} parent=1 // pred_check
      _
    $region3: #{tpu_custom_call.1} parent=1 // pred_check_branch
      %10 = sbr.rel (0) target = $region5
    $region4: #{tpu_custom_call.1} parent=1 // pred_region
      _
    $region5: #{tpu_custom_call.1} parent=1 // pred_fallthru
      _
    // Predicated region
    $region6: #{tpu_custom_call.1} parent=1 // pred_check
      _
    $region7: #{tpu_custom_call.1} parent=1 // pred_check_branch
      %12 = sbr.rel (0) target = $region9
    $region8: #{tpu_custom_call.1} parent=1 // pred_region
      _
    $region9: #{tpu_custom_call.1} parent=1 // pred_fallthru
      _
    // Predicated region
    $region10: #{tpu_custom_call.1} parent=1 // pred_check
      _
    $region11: #{tpu_custom_call.1} parent=1 // pred_check_branch
      %14 = sbr.rel (0) target = $region13
    $region12: #{tpu_custom_call.1} parent=1 // pred_region
      _
    $region13: #{tpu_custom_call.1} parent=1 // pred_fallthru
      _
    %v15 = vld [vmem:[%s0] sm:$0xff]
    %v16 = vld [vmem:[%s0 + $0x8] sm:$0xff]
    %v17 = vld [vmem:[%s0 + $0x10] sm:$0xff]
    %v18 = vld [vmem:[%s1] sm:$0xff]
    %19 = vmatprep.subr.mxu0 0.0
    %20 = vmatpush1.xpose.msra.mxu0 0.0
    %21 = vmatprep.subr.mxu0 0.0
    %22 = vmatpush1.xpose.msra.mxu0 0.0
    %23 = vmatprep.subr.mxu0 0.0
    %24 = vmatpush1.xpose.msra.mxu0 0.0
    %25 = vmatprep.subr.mxu0 0.0
    %26 = vmatpush1.xpose.msra.mxu0 0.0
    %27 = vmatprep.subr.mxu0 0.0
    %28 = vmatpush1.xpose.msra.mxu0 0.0
    %29 = vmatprep.subr.mxu0 0.0
    %30 = vmatpush1.xpose.msra.mxu0 0.0
    %31 = vmatprep.subr.mxu0 0.0
    %32 = vmatpush1.xpose.msra.mxu0 0.0
    %33 = vmatprep.subr.mxu0 0.0
    %34 = vmatpush1.xpose.msra.mxu0 0.0
    %35 = vmatprep.subr.mxu0 0.0
    %36 = vmatpush1.xpose.msra.mxu0 0.0
    %37 = vmatprep.subr.mxu0 0.0
    %38 = vmatpush1.xpose.msra.mxu0 0.0
    %39 = vmatprep.subr.mxu0 0.0
    %40 = vmatpush1.xpose.msra.mxu0 0.0
    %41 = vmatprep.subr.mxu0 0.0
    %42 = vmatpush1.xpose.msra.mxu0 0.0
    %43 = vmatprep.subr.mxu0 0.0
    %44 = vmatpush1.xpose.msra.mxu0 0.0
    %45 = vmatprep.subr.mxu0 0.0
    %46 = vmatpush1.xpose.msra.mxu0 0.0
    %47 = vmatprep.subr.mxu0 0.0
    %48 = vmatpush1.xpose.msra.mxu0 0.0
    %49 = vmatprep.subr.mxu0 0.0
    %50 = vmatpush1.xpose.msra.mxu0 %v18
    %51 = vmatprep.subr.mxu0 0.0
    %52 = vmatpush2.xpose.msra.mxu0 0.0
    %53 = vmatprep.subr.mxu0 0.0
    %54 = vmatpush2.xpose.msra.mxu0 0.0
    %55 = vmatprep.subr.mxu0 0.0
    %56 = vmatpush2.xpose.msra.mxu0 0.0
    %57 = vmatprep.subr.mxu0 0.0
    %58 = vmatpush2.xpose.msra.mxu0 0.0
    %59 = vmatprep.subr.mxu0 0.0
    %60 = vmatpush2.xpose.msra.mxu0 0.0
    %61 = vmatprep.subr.mxu0 0.0
    %62 = vmatpush2.xpose.msra.mxu0 0.0
    %63 = vmatprep.subr.mxu0 0.0
    %64 = vmatpush2.xpose.msra.mxu0 0.0
    %65 = vmatprep.subr.mxu0 0.0
    %66 = vmatpush2.xpose.msra.mxu0 0.0
    %67 = vmatprep.subr.mxu0 0.0
    %68 = vmatpush2.xpose.msra.mxu0 0.0
    %69 = vmatprep.subr.mxu0 0.0
    %70 = vmatpush2.xpose.msra.mxu0 0.0
    %71 = vmatprep.subr.mxu0 0.0
    %72 = vmatpush2.xpose.msra.mxu0 0.0
    %73 = vmatprep.subr.mxu0 0.0
    %74 = vmatpush2.xpose.msra.mxu0 0.0
    %75 = vmatprep.subr.mxu0 0.0
    %76 = vmatpush2.xpose.msra.mxu0 0.0
    %77 = vmatprep.subr.mxu0 0.0
    %78 = vmatpush2.xpose.msra.mxu0 0.0
    %79 = vmatprep.subr.mxu0 0.0
    %80 = vmatpush2.xpose.msra.mxu0 0.0
    %81 = vmatprep.subr.mxu0 0.0
    %82 = vmatpush2.xpose.msra.mxu0 0.0
    %83 = vmatprep.mubr.f32.mxu0 0.0
    %84 = vmatmul.mubr.f32.gmra.mxu0 %v15
    %v85 = vpop.f32.mrf.mxu0
    %v86 = vadd.f32 0.0, %v85
    %v87 = vpop.f32.mrf.mxu0
    %88 = vmatprep.mubr.f32.mxu0 0.0
    %89 = vmatmul.mubr.f32.gmra.mxu0 %v16
    %v90 = vpop.f32.mrf.mxu0
    %v91 = vadd.f32 0.0, %v90
    %v92 = vpop.f32.mrf.mxu0
    %93 = vmatprep.mubr.f32.mxu0 0.0
    %94 = vmatmul.mubr.f32.gmra.mxu0 %v17
    %v95 = vpop.f32.mrf.mxu0
    %v96 = vadd.f32 0.0, %v95
    %v97 = vpop.f32.mrf.mxu0
    %98 = vdwg.mxu0
    %v99 = vlaneseq
    %v100 = vshrl.u32 %v99, 7
    %v101 = vadd.s32 %v100, 8
    %v102 = vadd.s32 %v100, 16
    %vm103 = vcmp.lt.s32.totalorder %v100, 8
    %vm104 = vcmp.lt.s32.totalorder %v101, 8
    %vm105 = vcmp.lt.s32.totalorder %v102, 8
    %v106 = vsub.f32 0.0, %v86
    %v107 = vsub.f32 0.0, %v91
    %v108 = vsub.f32 0.0, %v96
    %v109 = vsel %vm103, %v86, %v106
    %v110 = vsel %vm104, %v91, %v107
    %v111 = vsel %vm105, %v96, %v108
    %v112 = vxor.u32 %v109, 2147483648
    %v113 = vxor.u32 %v110, 2147483648
    %v114 = vxor.u32 %v111, 2147483648
    %v115 = vmul.f32 %v112, 1.442695
    %v116 = vpow.pop %v115
    %v117 = vmul.f32 %v113, 1.442695
    %v118 = vpow.pop %v117
    %v119 = vmul.f32 %v114, 1.442695
    %v120 = vpow.pop %v119
    %v121 = vadd.f32 %v116, 1.0
    %v122 = vadd.f32 %v118, 1.0
    %v123 = vadd.f32 %v120, 1.0
    %v124 = vrcp.pop %v121
    %v125 = vmul.f32 1.0, %v124
    %v126 = vrcp.pop %v122
    %v127 = vmul.f32 1.0, %v126
    %v128 = vrcp.pop %v123
    %v129 = vmul.f32 1.0, %v128
    %v130 = vadd.f32 %v125, 1e-10
    %v131 = vadd.f32 %v127, 1e-10
    %v132 = vadd.f32 %v129, 1e-10
    %v133 = vlog2.pop %v130
    %v134 = vmul.f32 %v133, 0.6931472
    %v135 = vlog2.pop %v131
    %v136 = vmul.f32 %v135, 0.6931472
    %v137 = vlog2.pop %v132
    %v138 = vmul.f32 %v137, 0.6931472
    %v139 = vld [vmem:[%s2] sm:$0xff]
    %v140 = vld [vmem:[%s2 + $0x8] sm:$0xff]
    %v141 = vld [vmem:[%s2 + $0x10] sm:$0xff]
    %v142 = vmul.f32 %v134, %v139
    %v143 = vmul.f32 %v136, %v140
    %v144 = vmul.f32 %v138, %v141
    %vm145 = vcmask 64512
    %v146 = vsel %vm145, %v142, 0.0
    %v147 = vsel %vm145, %v143, 0.0
    %v148 = vadd.f32 %v146, %v147
    %v149 = vsel %vm145, %v144, 0.0
    %v150 = vadd.f32 %v148, %v149
    %151 = vadd.xlane.f32.xlu0 %v150
    %v152 = vpop.xlane.xlu0 %151
    %v153 = vrot.slane %v152, 4
    %v154 = vadd.f32 %v152, %v153
    %v155 = vrot.slane %v154, 2
    %v156 = vadd.f32 %v154, %v155
    %v157 = vrot.slane %v156, 1
    %v158 = vadd.f32 %v156, %v157
    %s159 = vtos %v158
    %s160 = ssub.f32 0.0, %s159
    %s161 = scalar_lea.smem [#allocation2], 0
    %162 = sst [smem:[%s161]] %s160
    // Predicated region
    $region14: #{tpu_custom_call.1} parent=1 // pred_check
      _
    $region15: #{tpu_custom_call.1} parent=1 // pred_check_branch
      %164 = sbr.rel (0) target = $region17
    $region16: #{tpu_custom_call.1} parent=1 // pred_region
      %s166 = ssub.s32 16, 16
      %167 = vsyncadd [#allocation3], %s166
      %170 = dma.smem_to_hbm [#allocation2], 16, %s3, [#allocation3]
    $region17: #{tpu_custom_call.1} parent=1 // pred_fallthru
      _
    // Predicated region
    $region18: #{tpu_custom_call.1} parent=1 // pred_check
      _
    $region19: #{tpu_custom_call.1} parent=1 // pred_check_branch
      %172 = sbr.rel (0) target = $region21
    $region20: #{tpu_custom_call.1} parent=1 // pred_region
      %173 = dma.done [#allocation3], 16
    $region21: #{tpu_custom_call.1} parent=1 // pred_fallthru
      _
    %174 = sfence
    %175 = vsyncpa [#allocation3], 1

</llo_original>
